<compile_context>
chip_gen: v7x
topology: tpu7x:2x2x1
jax: 0.10.0
libtpu: 0.0.40
codegen_flags: <defaults>
</compile_context>

<pallas_src>
import numpy as np
import jax
import jax.numpy as jnp
from jax.experimental import pallas as pl
from jax.experimental.pallas import tpu as pltpu


def build_pe_table(max_len: int, d_model: int) -> jnp.ndarray:
    """Sinusoidal positional-encoding table, shape (max_len, d_model).

    Matches the PyTorch module (which only supports even d_model).
    """
    if d_model % 2 != 0:
        raise ValueError("d_model must be even (as in the PyTorch reference).")
    position = np.arange(max_len, dtype=np.float32)[:, None]              # (max_len, 1)
    div_term = np.exp(np.arange(0, d_model, 2, dtype=np.float32)
                      * (-np.log(10000.0) / d_model))                     # (d_model//2,)
    pe = np.zeros((max_len, d_model), dtype=np.float32)
    pe[:, 0::2] = np.sin(position * div_term)
    pe[:, 1::2] = np.cos(position * div_term)
    return jnp.asarray(pe)


def _posenc_kernel(x_ref, pe_ref, o_ref):
    # x_ref / o_ref: (TS, B*D) lane-dense slab;  pe_ref: (TS, D).
    # Broadcast pe over the batch axis by tiling it along lanes (columns of the
    # slab are ordered batch-major, feature-minor), then add on the VPU.
    pe = pe_ref[...]
    b = x_ref.shape[1] // pe_ref.shape[1]
    if b > 1:
        pe = jnp.concatenate([pe] * b, axis=-1)
    o_ref[...] = x_ref[...] + pe


def positional_encoding(x, pe_table, *, tile_bytes=2 * 1024 * 1024,
                        vmem_limit_bytes=None):
    """x: (seq_len, batch, d_model). Returns x + pe[:seq_len] (eval-mode dropout = identity)."""
    S, B, D = x.shape
    if S > pe_table.shape[0]:
        raise ValueError(f"seq_len {S} exceeds positional table length {pe_table.shape[0]}")
    dtype = x.dtype
    pe_slice = pe_table[:S].astype(dtype)          # (S, D); also supports bf16 inputs
    x2d = x.reshape(S, B * D)                      # free reshape of a contiguous array

    # Row-tile size: target ~tile_bytes of x per grid step, aligned to the
    # sublane packing of the dtype (8 rows for f32, 16 for bf16, ...).
    itemsize = jnp.dtype(dtype).itemsize
    sublane = 8 * max(1, 4 // itemsize)
    rows = max(1, tile_bytes // max(1, B * D * itemsize))
    ts = max(sublane, (rows // sublane) * sublane)
    ts = min(ts, S)                                # ts == S (full extent) is always legal

    grid = (pl.cdiv(S, ts),)

    return pl.pallas_call(
        _posenc_kernel,
        out_shape=jax.ShapeDtypeStruct((S, B * D), dtype),
        grid=grid,
        in_specs=[
            pl.BlockSpec((ts, B * D), lambda i: (i, 0)),   # x slab tile
            pl.BlockSpec((ts, D), lambda i: (i, 0)),       # matching pe rows
        ],
        out_specs=pl.BlockSpec((ts, B * D), lambda i: (i, 0)),
        input_output_aliases={0: 0},               # in-place update of x's HBM buffer
        compiler_params=pltpu.CompilerParams(
            dimension_semantics=("parallel",),     # megacore sharding on v7x
            vmem_limit_bytes=vmem_limit_bytes,
        ),
    )(x2d, pe_slice).reshape(S, B, D)


if __name__ == "__main__":
    d_model = 32
    max_len = 64      # small synthetic table (module default is 5000)
    seq_len = 8
    batch = 2

    pe_table = build_pe_table(max_len, d_model)

    key = jax.random.PRNGKey(0)
    x = jax.random.normal(key, (seq_len, batch, d_model), dtype=jnp.float32)

    posenc = jax.jit(positional_encoding)
    out = jax.block_until_ready(posenc(x, pe_table))

    # sanity check against a plain-JAX reference
    ref = x + pe_table[:seq_len][:, None, :]
    np.testing.assert_allclose(np.asarray(out), np.asarray(ref), rtol=1e-6, atol=1e-6)

    print("KERNEL_OK")
</pallas_src>

<mosaic_0001>
module attributes {stable_mosaic.version = 11 : i64} {
  func.func @_posenc_kernel(%arg0: i32, %arg1: memref<8x64xf32, #tpu.memory_space<vmem>>, %arg2: memref<8x32xf32, #tpu.memory_space<vmem>>, %arg3: memref<8x64xf32, #tpu.memory_space<vmem>>) attributes {dimension_semantics = [#tpu.dimension_semantics<parallel>], iteration_bounds = array<i64: 1>, scalar_prefetch = 0 : i64, scratch_operands = 0 : i64, tpu.core_type = #tpu.core_type<tc>, window_params = [{transform_indices = @transform_0, window_bounds = array<i64: 8, 64>}, {transform_indices = @transform_1, window_bounds = array<i64: 8, 32>}, {transform_indices = @transform_2, window_bounds = array<i64: 8, 64>}]} {
    %c0 = arith.constant 0 : index
    %c0_0 = arith.constant 0 : index
    %0 = vector.load %arg2[%c0, %c0_0] : memref<8x32xf32, #tpu.memory_space<vmem>>, vector<8x32xf32>
    %1 = tpu.concatenate %0, %0 in 1 : vector<8x32xf32>, vector<8x32xf32> -> vector<8x64xf32>
    %c0_1 = arith.constant 0 : index
    %c0_2 = arith.constant 0 : index
    %2 = vector.load %arg1[%c0_1, %c0_2] : memref<8x64xf32, #tpu.memory_space<vmem>>, vector<8x64xf32>
    %3 = arith.addf %2, %1 : vector<8x64xf32>
    %c0_3 = arith.constant 0 : index
    %c0_4 = arith.constant 0 : index
    %4 = vector.load %arg3[%c0_3, %c0_4] : memref<8x64xf32, #tpu.memory_space<vmem>>, vector<8x64xf32>
    tpu.vector_store %arg3[%c0_3, %c0_4], %3 {strides = array<i32>} : memref<8x64xf32, #tpu.memory_space<vmem>>, vector<8x64xf32>,
    return
  }
  func.func @transform_0(%arg0: i32) -> (i32, i32) {
    %c0_i32 = arith.constant 0 : i32
    %c0_i32_0 = arith.constant 0 : i32
    return %arg0, %c0_i32 : i32, i32
  }
  func.func @transform_1(%arg0: i32) -> (i32, i32) {
    %c0_i32 = arith.constant 0 : i32
    %c0_i32_0 = arith.constant 0 : i32
    return %arg0, %c0_i32 : i32, i32
  }
  func.func @transform_2(%arg0: i32) -> (i32, i32) {
    %c0_i32 = arith.constant 0 : i32
    %c0_i32_0 = arith.constant 0 : i32
    return %arg0, %c0_i32 : i32, i32
  }
}

</mosaic_0001>

<llo_original>
// kernel: positional_encoding.1
$region0: #{positional_encoding.1}
  #allocation0 [shape = 'u32[]', space=smem, size = 0x4, offset = 0x4, fixed_abs, tag = 'smem constant byte address 0x4 - core index']
  #allocation1 [shape = 'u32[144,128]{1,0:T(1,128)}', space=vmem, size = 0x12000, scoped, tag = 'internal scratch']
  %s0 = inlined_call_operand.vmem [shape: f32[8,64], index: 0, kind: input, shape index: {}, may-alias: {0,2}]
  %s1 = inlined_call_operand.vmem [shape: f32[8,32], index: 1, kind: input, shape index: {}]
  %s2 = inlined_call_operand.vmem [shape: f32[8,64], index: 2, kind: output, shape index: {}, may-alias: {0,2}]
  %s3 = sld [smem:[#allocation0]]
  $region18: #{positional_encoding.1} parent=0
    _
  %s5 = ssub.s32 1, %s3
  %s6 = scalar_select 0, %s5, %s3
  // Predicated region
  $region2: #{positional_encoding.1} parent=0 // pred_check
    _
  $region3: #{positional_encoding.1} parent=0 // pred_check_branch
    %8 = sbr.rel (0) target = $region5
  $region4: #{positional_encoding.1} parent=0 // pred_region
    _
  $region5: #{positional_encoding.1} parent=0 // pred_fallthru
    _
  // Predicated region
  $region6: #{positional_encoding.1} parent=0 // pred_check
    _
  $region7: #{positional_encoding.1} parent=0 // pred_check_branch
    %10 = sbr.rel (0) target = $region9
  $region8: #{positional_encoding.1} parent=0 // pred_region
    _
  $region9: #{positional_encoding.1} parent=0 // pred_fallthru
    _
  %v11 = vld [vmem:[%s1] sm:$0xff]
  %13 = vrot.lane.b32.xlu0 %v11, 32
  %v14 = vpop.permute.xlu0 %13
  %vm16 = vcmask 261120
  %v17 = vsel %vm16, %v11, %v14
  %v18 = vld [vmem:[%s0] sm:$0xff]
  %v19 = vadd.f32 %v18, %v17
  %vm20 = vcmask 523264
  %21 = vst.msk [vmem:[%s2] sm:$0xff] %vm20, %v19
  // Predicated region
  $region10: #{positional_encoding.1} parent=0 // pred_check
    _
  $region11: #{positional_encoding.1} parent=0 // pred_check_branch
    %23 = sbr.rel (0) target = $region13
  $region12: #{positional_encoding.1} parent=0 // pred_region
    _
  $region13: #{positional_encoding.1} parent=0 // pred_fallthru
    _
  // Predicated region
  $region14: #{positional_encoding.1} parent=0 // pred_check
    _
  $region15: #{positional_encoding.1} parent=0 // pred_check_branch
    %25 = sbr.rel (0) target = $region17
  $region16: #{positional_encoding.1} parent=0 // pred_region
    _
  $region17: #{positional_encoding.1} parent=0 // pred_fallthru
    _

</llo_original>
